<compile_context>
chip_gen: v5e
topology: v5e:2x2
jax: 0.10.0
libtpu: 0.0.40
codegen_flags: <defaults>
</compile_context>

<pallas_src>
import functools

import jax
import jax.numpy as jnp
from jax.experimental import pallas as pl
from jax.experimental.pallas import tpu as pltpu

_LANE = 128      # lane width of a vreg
_SUBLANE = 8     # sublane count of a vreg


def _round_up(x, m):
    return ((x + m - 1) // m) * m


def _fused_mlp_kernel(x_ref, *refs, num_layers, use_bf16):
    """Entire [Linear -> ReLU]*H + Linear chain on one VMEM-resident M-tile.

    refs = (w0, b0, w1, b1, ..., w_{L-1}, b_{L-1}, o_ref); all tiles padded to
    lane-dense (multiple-of-128) widths with zeros, which propagate exactly.
    Weights may be pre-cast bf16 (use_bf16=True); biases stay f32.
    """
    o_ref = refs[-1]
    h = x_ref[...]                                   # f32 activations
    for layer in range(num_layers):
        w = refs[2 * layer][...]
        b = refs[2 * layer + 1][...]                 # (1, N) broadcasts over rows
        lhs = h.astype(jnp.bfloat16) if use_bf16 else h
        acc = jnp.dot(lhs, w, preferred_element_type=jnp.float32)
        h = acc + b
        if layer < num_layers - 1:                   # ReLU on hidden layers only
            h = jnp.maximum(h, 0.0)
    o_ref[...] = h.astype(o_ref.dtype)


def init_params(key, n_feature, nums_hidden, n_output):
    """Mirror Net._init_params: weight ~ N(0, 0.1), bias = 0."""
    dims = [n_feature] + list(nums_hidden) + [n_output]
    params = []
    for i in range(len(dims) - 1):
        key, sub = jax.random.split(key)
        # torch Linear weight is (out, in); we store transposed (in, out).
        w = 0.1 * jax.random.normal(sub, (dims[i], dims[i + 1]), jnp.float32)
        b = jnp.zeros((1, dims[i + 1]), jnp.float32)
        params.append((w, b))
    return params


def prepare_params(params, n_feature, *, use_bf16=False):
    """Pad (and optionally pre-cast) every weight/bias ONCE, outside jit.

    Returns (flat_padded_params, dims) where dims is the static tuple of
    layer widths (n_feature, hidden..., n_output).
    """
    dims = (n_feature,) + tuple(w.shape[1] for w, _ in params)
    pdims = [_round_up(d, _LANE) for d in dims]
    flat = []
    for layer, (w, b) in enumerate(params):
        pin, pout = pdims[layer], pdims[layer + 1]
        w_p = jnp.pad(w, ((0, pin - w.shape[0]), (0, pout - w.shape[1])))
        if use_bf16:
            w_p = w_p.astype(jnp.bfloat16)           # pre-cast in HBM (v6e/v7x)
        b_p = jnp.pad(b, ((0, 0), (0, pout - b.shape[1])))  # bias stays f32
        flat.append(jax.device_put(w_p))
        flat.append(jax.device_put(b_p))
    return tuple(flat), dims


def fused_mlp(x, flat_params, dims, *, use_bf16=False, single_buffer_weights=True):
    """x: (M, n_feature) f32; flat_params: pre-padded (w, b) pairs, flattened."""
    M, K0 = x.shape
    assert K0 == dims[0], "x feature dim does not match prepared params"
    num_layers = len(dims) - 1
    pdims = [_round_up(d, _LANE) for d in dims]
    widest = max(pdims)
    out_pad = pdims[-1]

    # ---- M tile selection -------------------------------------------------
    # Small batch: one tile, padded to a sublane multiple. Large batch: grow
    # the tile (fewer grid steps, better HBM roofline) but keep >= 2 grid
    # steps so both v7x TensorCores get work, and bound the activation slab.
    if M <= _LANE:
        tm = _round_up(M, _SUBLANE)
    else:
        tm = _LANE
        for cand in (256, 512):
            if M >= 2 * cand and 2 * cand * widest * 4 <= (16 << 20):
                tm = cand
    m_pad = _round_up(M, tm)
    grid = (m_pad // tm,)

    # Zero-pad the input (padded cols are 0 -> exact semantics preserved).
    x_p = jnp.pad(x, ((0, m_pad - M), (0, pdims[0] - K0)))

    # ---- BlockSpecs --------------------------------------------------------
    # x/out stream over the M grid axis (default double-buffered). Weights and
    # biases have index_maps constant in the grid index -> fetched once and
    # kept VMEM-resident; single-buffer them to halve their VMEM footprint.
    wkwargs = {"pipeline_mode": pl.Buffered(1)} if single_buffer_weights else {}
    in_specs = [pl.BlockSpec((tm, pdims[0]), lambda i: (i, 0))]
    for layer in range(num_layers):
        pin, pout = pdims[layer], pdims[layer + 1]
        in_specs.append(pl.BlockSpec((pin, pout), lambda i: (0, 0), **wkwargs))
        in_specs.append(pl.BlockSpec((1, pout), lambda i: (0, 0), **wkwargs))

    # ---- explicit VMEM budget ----------------------------------------------
    w_item = 2 if use_bf16 else 4
    wbuf_count = 1 if single_buffer_weights else 2
    w_raw_bytes = sum(pdims[l] * pdims[l + 1] * w_item + pdims[l + 1] * 4
                      for l in range(num_layers))
    w_bytes = w_raw_bytes * wbuf_count
    io_bytes = 2 * (tm * pdims[0] + tm * out_pad) * 4      # double-buffered x/out
    act_bytes = 2 * tm * widest * 4                        # live activation slabs
    needed = w_bytes + io_bytes + act_bytes
    vmem_limit = int(min(max(2 * needed, 32 << 20), 48 << 20))

    # ---- cost estimate for the XLA scheduler --------------------------------
    flops = 2 * m_pad * sum(pdims[l] * pdims[l + 1] for l in range(num_layers))
    bytes_accessed = int(m_pad * pdims[0] * 4 + w_raw_bytes + m_pad * out_pad * 4)
    cost = pl.CostEstimate(flops=flops, transcendentals=0,
                           bytes_accessed=bytes_accessed)

    kernel = functools.partial(_fused_mlp_kernel,
                               num_layers=num_layers, use_bf16=use_bf16)
    out = pl.pallas_call(
        kernel,
        out_shape=jax.ShapeDtypeStruct((m_pad, out_pad), jnp.float32),
        grid=grid,
        in_specs=in_specs,
        out_specs=pl.BlockSpec((tm, out_pad), lambda i: (i, 0)),
        compiler_params=pltpu.CompilerParams(
            # M axis is embarrassingly parallel -> v7x's 2 TCs split the rows.
            dimension_semantics=("parallel",),
            vmem_limit_bytes=vmem_limit,
        ),
        cost_estimate=cost,
    )(x_p, *flat_params)
    return out[:M, :dims[-1]]


@functools.partial(jax.jit,
                   static_argnames=("dims", "use_bf16", "single_buffer_weights"))
def net_forward(x, flat_params, dims, use_bf16=False, single_buffer_weights=True):
    return fused_mlp(x, flat_params, dims, use_bf16=use_bf16,
                     single_buffer_weights=single_buffer_weights)


if __name__ == "__main__":
    n_feature = 32
    nums_hidden = [64, 128]
    n_output = 16
    batch = 8

    key = jax.random.PRNGKey(0)
    key, xkey = jax.random.split(key)
    x = jax.random.normal(xkey, (batch, n_feature), jnp.float32)

    params = init_params(key, n_feature, nums_hidden, n_output)
    # Pad / lay out the weights ONCE, outside the jitted forward.
    # (use_bf16=True pre-casts weights for the v6e/v7x MXU path; kept False
    #  here for exact f32 parity with the torch module.)
    flat_params, dims = prepare_params(params, n_feature, use_bf16=False)

    try:
        out = net_forward(x, flat_params, dims)
        jax.block_until_ready(out)
    except Exception:
        # Fallback for jax builds without single-buffered BlockSpec support.
        out = net_forward(x, flat_params, dims, single_buffer_weights=False)
        jax.block_until_ready(out)

    # sanity check against a pure-JAX reference of the same math
    ref = x
    for w, b in params[:-1]:
        ref = jnp.maximum(ref @ w + b, 0.0)
    ref = ref @ params[-1][0] + params[-1][1]
    assert out.shape == (batch, n_output)
    assert jnp.allclose(out, ref, atol=1e-5, rtol=1e-5)

    print("KERNEL_OK")
</pallas_src>

<mosaic_0001>
module attributes {stable_mosaic.version = 11 : i64} {
  func.func @_fused_mlp_kernel(%arg0: i32, %arg1: memref<8x128xf32, #tpu.memory_space<vmem>>, %arg2: memref<128x128xf32, #tpu.memory_space<vmem>>, %arg3: memref<1x128xf32, #tpu.memory_space<vmem>>, %arg4: memref<128x128xf32, #tpu.memory_space<vmem>>, %arg5: memref<1x128xf32, #tpu.memory_space<vmem>>, %arg6: memref<128x128xf32, #tpu.memory_space<vmem>>, %arg7: memref<1x128xf32, #tpu.memory_space<vmem>>, %arg8: memref<8x128xf32, #tpu.memory_space<vmem>>) attributes {dimension_semantics = [#tpu.dimension_semantics<parallel>], iteration_bounds = array<i64: 1>, scalar_prefetch = 0 : i64, scratch_operands = 0 : i64, tpu.core_type = #tpu.core_type<tc>, window_params = [{transform_indices = @transform_0, window_bounds = array<i64: 8, 128>}, {pipeline_mode = #tpu.pipeline_mode<synchronous>, transform_indices = @transform_1, window_bounds = array<i64: 128, 128>}, {pipeline_mode = #tpu.pipeline_mode<synchronous>, transform_indices = @transform_2, window_bounds = array<i64: 1, 128>}, {pipeline_mode = #tpu.pipeline_mode<synchronous>, transform_indices = @transform_3, window_bounds = array<i64: 128, 128>}, {pipeline_mode = #tpu.pipeline_mode<synchronous>, transform_indices = @transform_4, window_bounds = array<i64: 1, 128>}, {pipeline_mode = #tpu.pipeline_mode<synchronous>, transform_indices = @transform_5, window_bounds = array<i64: 128, 128>}, {pipeline_mode = #tpu.pipeline_mode<synchronous>, transform_indices = @transform_6, window_bounds = array<i64: 1, 128>}, {transform_indices = @transform_7, window_bounds = array<i64: 8, 128>}]} {
    %c0 = arith.constant 0 : index
    %c0_0 = arith.constant 0 : index
    %0 = vector.load %arg1[%c0, %c0_0] : memref<8x128xf32, #tpu.memory_space<vmem>>, vector<8x128xf32>
    %c0_1 = arith.constant 0 : index
    %c0_2 = arith.constant 0 : index
    %1 = vector.load %arg2[%c0_1, %c0_2] : memref<128x128xf32, #tpu.memory_space<vmem>>, vector<128x128xf32>
    %c0_3 = arith.constant 0 : index
    %c0_4 = arith.constant 0 : index
    %2 = vector.load %arg3[%c0_3, %c0_4] : memref<1x128xf32, #tpu.memory_space<vmem>>, vector<1x128xf32>
    %cst = arith.constant dense<0.000000e+00> : vector<8x128xf32>
    %3 = tpu.matmul %0, %1, %cst {dimension_numbers = #tpu.dot_dimension_numbers<[1], [0], [0], [1], [0, 0, 1, 1], [], []>} : vector<8x128xf32>, vector<128x128xf32>, vector<8x128xf32> -> vector<8x128xf32>
    %4 = vector.broadcast %2 : vector<1x128xf32> to vector<8x128xf32>
    %5 = arith.addf %3, %4 : vector<8x128xf32>
    %cst_5 = arith.constant 0.000000e+00 : f32
    %6 = vector.broadcast %cst_5 : f32 to vector<8x128xf32>
    %7 = arith.maximumf %5, %6 : vector<8x128xf32>
    %c0_6 = arith.constant 0 : index
    %c0_7 = arith.constant 0 : index
    %8 = vector.load %arg4[%c0_6, %c0_7] : memref<128x128xf32, #tpu.memory_space<vmem>>, vector<128x128xf32>
    %c0_8 = arith.constant 0 : index
    %c0_9 = arith.constant 0 : index
    %9 = vector.load %arg5[%c0_8, %c0_9] : memref<1x128xf32, #tpu.memory_space<vmem>>, vector<1x128xf32>
    %cst_10 = arith.constant dense<0.000000e+00> : vector<8x128xf32>
    %10 = tpu.matmul %7, %8, %cst_10 {dimension_numbers = #tpu.dot_dimension_numbers<[1], [0], [0], [1], [0, 0, 1, 1], [], []>} : vector<8x128xf32>, vector<128x128xf32>, vector<8x128xf32> -> vector<8x128xf32>
    %11 = vector.broadcast %9 : vector<1x128xf32> to vector<8x128xf32>
    %12 = arith.addf %10, %11 : vector<8x128xf32>
    %cst_11 = arith.constant 0.000000e+00 : f32
    %13 = vector.broadcast %cst_11 : f32 to vector<8x128xf32>
    %14 = arith.maximumf %12, %13 : vector<8x128xf32>
    %c0_12 = arith.constant 0 : index
    %c0_13 = arith.constant 0 : index
    %15 = vector.load %arg6[%c0_12, %c0_13] : memref<128x128xf32, #tpu.memory_space<vmem>>, vector<128x128xf32>
    %c0_14 = arith.constant 0 : index
    %c0_15 = arith.constant 0 : index
    %16 = vector.load %arg7[%c0_14, %c0_15] : memref<1x128xf32, #tpu.memory_space<vmem>>, vector<1x128xf32>
    %cst_16 = arith.constant dense<0.000000e+00> : vector<8x128xf32>
    %17 = tpu.matmul %14, %15, %cst_16 {dimension_numbers = #tpu.dot_dimension_numbers<[1], [0], [0], [1], [0, 0, 1, 1], [], []>} : vector<8x128xf32>, vector<128x128xf32>, vector<8x128xf32> -> vector<8x128xf32>
    %18 = vector.broadcast %16 : vector<1x128xf32> to vector<8x128xf32>
    %19 = arith.addf %17, %18 : vector<8x128xf32>
    %c0_17 = arith.constant 0 : index
    %c0_18 = arith.constant 0 : index
    %20 = vector.load %arg8[%c0_17, %c0_18] : memref<8x128xf32, #tpu.memory_space<vmem>>, vector<8x128xf32>
    tpu.vector_store %arg8[%c0_17, %c0_18], %19 {strides = array<i32>} : memref<8x128xf32, #tpu.memory_space<vmem>>, vector<8x128xf32>,
    return
  }
  func.func @transform_0(%arg0: i32) -> (i32, i32) {
    %c0_i32 = arith.constant 0 : i32
    %c0_i32_0 = arith.constant 0 : i32
    return %arg0, %c0_i32 : i32, i32
  }
  func.func @transform_1(%arg0: i32) -> (i32, i32) {
    %c0_i32 = arith.constant 0 : i32
    %c0_i32_0 = arith.constant 0 : i32
    %c0_i32_1 = arith.constant 0 : i32
    return %c0_i32, %c0_i32_0 : i32, i32
  }
  func.func @transform_2(%arg0: i32) -> (i32, i32) {
    %c0_i32 = arith.constant 0 : i32
    %c0_i32_0 = arith.constant 0 : i32
    %c0_i32_1 = arith.constant 0 : i32
    return %c0_i32, %c0_i32_0 : i32, i32
  }
  func.func @transform_3(%arg0: i32) -> (i32, i32) {
    %c0_i32 = arith.constant 0 : i32
    %c0_i32_0 = arith.constant 0 : i32
    %c0_i32_1 = arith.constant 0 : i32
    return %c0_i32, %c0_i32_0 : i32, i32
  }
  func.func @transform_4(%arg0: i32) -> (i32, i32) {
    %c0_i32 = arith.constant 0 : i32
    %c0_i32_0 = arith.constant 0 : i32
    %c0_i32_1 = arith.constant 0 : i32
    return %c0_i32, %c0_i32_0 : i32, i32
  }
  func.func @transform_5(%arg0: i32) -> (i32, i32) {
    %c0_i32 = arith.constant 0 : i32
    %c0_i32_0 = arith.constant 0 : i32
    %c0_i32_1 = arith.constant 0 : i32
    return %c0_i32, %c0_i32_0 : i32, i32
  }
  func.func @transform_6(%arg0: i32) -> (i32, i32) {
    %c0_i32 = arith.constant 0 : i32
    %c0_i32_0 = arith.constant 0 : i32
    %c0_i32_1 = arith.constant 0 : i32
    return %c0_i32, %c0_i32_0 : i32, i32
  }
  func.func @transform_7(%arg0: i32) -> (i32, i32) {
    %c0_i32 = arith.constant 0 : i32
    %c0_i32_0 = arith.constant 0 : i32
    return %arg0, %c0_i32 : i32, i32
  }
}

module attributes {stable_mosaic.version = 11 : i64} {
  func.func @_fused_mlp_kernel(%arg0: i32, %arg1: memref<8x128xf32, #tpu.memory_space<vmem>>, %arg2: memref<128x128xf32, #tpu.memory_space<vmem>>, %arg3: memref<1x128xf32, #tpu.memory_space<vmem>>, %arg4: memref<128x128xf32, #tpu.memory_space<vmem>>, %arg5: memref<1x128xf32, #tpu.memory_space<vmem>>, %arg6: memref<128x128xf32, #tpu.memory_space<vmem>>, %arg7: memref<1x128xf32, #tpu.memory_space<vmem>>, %arg8: memref<8x128xf32, #tpu.memory_space<vmem>>) attributes {dimension_semantics = [#tpu.dimension_semantics<parallel>], iteration_bounds = array<i64: 1>, scalar_prefetch = 0 : i64, scratch_operands = 0 : i64, tpu.core_type = #tpu.core_type<tc>, window_params = [{transform_indices = @transform_0, window_bounds = array<i64: 8, 128>}, {pipeline_mode = #tpu.pipeline_mode<synchronous>, transform_indices = @transform_1, window_bounds = array<i64: 128, 128>}, {pipeline_mode = #tpu.pipeline_mode<synchronous>, transform_indices = @transform_2, window_bounds = array<i64: 1, 128>}, {pipeline_mode = #tpu.pipeline_mode<synchronous>, transform_indices = @transform_3, window_bounds = array<i64: 128, 128>}, {pipeline_mode = #tpu.pipeline_mode<synchronous>, transform_indices = @transform_4, window_bounds = array<i64: 1, 128>}, {pipeline_mode = #tpu.pipeline_mode<synchronous>, transform_indices = @transform_5, window_bounds = array<i64: 128, 128>}, {pipeline_mode = #tpu.pipeline_mode<synchronous>, transform_indices = @transform_6, window_bounds = array<i64: 1, 128>}, {transform_indices = @transform_7, window_bounds = array<i64: 8, 128>}]} {
    %c0 = arith.constant 0 : index
    %c0_0 = arith.constant 0 : index
    %0 = vector.load %arg1[%c0, %c0_0] : memref<8x128xf32, #tpu.memory_space<vmem>>, vector<8x128xf32>
    %c0_1 = arith.constant 0 : index
    %c0_2 = arith.constant 0 : index
    %1 = vector.load %arg2[%c0_1, %c0_2] : memref<128x128xf32, #tpu.memory_space<vmem>>, vector<128x128xf32>
    %c0_3 = arith.constant 0 : index
    %c0_4 = arith.constant 0 : index
    %2 = vector.load %arg3[%c0_3, %c0_4] : memref<1x128xf32, #tpu.memory_space<vmem>>, vector<1x128xf32>
    %cst = arith.constant dense<0.000000e+00> : vector<8x128xf32>
    %3 = tpu.matmul %0, %1, %cst {dimension_numbers = #tpu.dot_dimension_numbers<[1], [0], [0], [1], [0, 0, 1, 1], [], []>} : vector<8x128xf32>, vector<128x128xf32>, vector<8x128xf32> -> vector<8x128xf32>
    %4 = vector.broadcast %2 : vector<1x128xf32> to vector<8x128xf32>
    %5 = arith.addf %3, %4 : vector<8x128xf32>
    %cst_5 = arith.constant 0.000000e+00 : f32
    %6 = vector.broadcast %cst_5 : f32 to vector<8x128xf32>
    %7 = arith.maximumf %5, %6 : vector<8x128xf32>
    %c0_6 = arith.constant 0 : index
    %c0_7 = arith.constant 0 : index
    %8 = vector.load %arg4[%c0_6, %c0_7] : memref<128x128xf32, #tpu.memory_space<vmem>>, vector<128x128xf32>
    %c0_8 = arith.constant 0 : index
    %c0_9 = arith.constant 0 : index
    %9 = vector.load %arg5[%c0_8, %c0_9] : memref<1x128xf32, #tpu.memory_space<vmem>>, vector<1x128xf32>
    %cst_10 = arith.constant dense<0.000000e+00> : vector<8x128xf32>
    %10 = tpu.matmul %7, %8, %cst_10 {dimension_numbers = #tpu.dot_dimension_numbers<[1], [0], [0], [1], [0, 0, 1, 1], [], []>} : vector<8x128xf32>, vector<128x128xf32>, vector<8x128xf32> -> vector<8x128xf32>
    %11 = vector.broadcast %9 : vector<1x128xf32> to vector<8x128xf32>
    %12 = arith.addf %10, %11 : vector<8x128xf32>
    %cst_11 = arith.constant 0.000000e+00 : f32
    %13 = vector.broadcast %cst_11 : f32 to vector<8x128xf32>
    %14 = arith.maximumf %12, %13 : vector<8x128xf32>
    %c0_12 = arith.constant 0 : index
    %c0_13 = arith.constant 0 : index
    %15 = vector.load %arg6[%c0_12, %c0_13] : memref<128x128xf32, #tpu.memory_space<vmem>>, vector<128x128xf32>
    %c0_14 = arith.constant 0 : index
    %c0_15 = arith.constant 0 : index
    %16 = vector.load %arg7[%c0_14, %c0_15] : memref<1x128xf32, #tpu.memory_space<vmem>>, vector<1x128xf32>
    %cst_16 = arith.constant dense<0.000000e+00> : vector<8x128xf32>
    %17 = tpu.matmul %14, %15, %cst_16 {dimension_numbers = #tpu.dot_dimension_numbers<[1], [0], [0], [1], [0, 0, 1, 1], [], []>} : vector<8x128xf32>, vector<128x128xf32>, vector<8x128xf32> -> vector<8x128xf32>
    %18 = vector.broadcast %16 : vector<1x128xf32> to vector<8x128xf32>
    %19 = arith.addf %17, %18 : vector<8x128xf32>
    %c0_17 = arith.constant 0 : index
    %c0_18 = arith.constant 0 : index
    %20 = vector.load %arg8[%c0_17, %c0_18] : memref<8x128xf32, #tpu.memory_space<vmem>>, vector<8x128xf32>
    tpu.vector_store %arg8[%c0_17, %c0_18], %19 {strides = array<i32>} : memref<8x128xf32, #tpu.memory_space<vmem>>, vector<8x128xf32>,
    return
  }
  func.func @transform_0(%arg0: i32) -> (i32, i32) {
    %c0_i32 = arith.constant 0 : i32
    %c0_i32_0 = arith.constant 0 : i32
    return %arg0, %c0_i32 : i32, i32
  }
  func.func @transform_1(%arg0: i32) -> (i32, i32) {
    %c0_i32 = arith.constant 0 : i32
    %c0_i32_0 = arith.constant 0 : i32
    %c0_i32_1 = arith.constant 0 : i32
    return %c0_i32, %c0_i32_0 : i32, i32
  }
  func.func @transform_2(%arg0: i32) -> (i32, i32) {
    %c0_i32 = arith.constant 0 : i32
    %c0_i32_0 = arith.constant 0 : i32
    %c0_i32_1 = arith.constant 0 : i32
    return %c0_i32, %c0_i32_0 : i32, i32
  }
  func.func @transform_3(%arg0: i32) -> (i32, i32) {
    %c0_i32 = arith.constant 0 : i32
    %c0_i32_0 = arith.constant 0 : i32
    %c0_i32_1 = arith.constant 0 : i32
    return %c0_i32, %c0_i32_0 : i32, i32
  }
  func.func @transform_4(%arg0: i32) -> (i32, i32) {
    %c0_i32 = arith.constant 0 : i32
    %c0_i32_0 = arith.constant 0 : i32
    %c0_i32_1 = arith.constant 0 : i32
    return %c0_i32, %c0_i32_0 : i32, i32
  }
  func.func @transform_5(%arg0: i32) -> (i32, i32) {
    %c0_i32 = arith.constant 0 : i32
    %c0_i32_0 = arith.constant 0 : i32
    %c0_i32_1 = arith.constant 0 : i32
    return %c0_i32, %c0_i32_0 : i32, i32
  }
  func.func @transform_6(%arg0: i32) -> (i32, i32) {
    %c0_i32 = arith.constant 0 : i32
    %c0_i32_0 = arith.constant 0 : i32
    %c0_i32_1 = arith.constant 0 : i32
    return %c0_i32, %c0_i32_0 : i32, i32
  }
  func.func @transform_7(%arg0: i32) -> (i32, i32) {
    %c0_i32 = arith.constant 0 : i32
    %c0_i32_0 = arith.constant 0 : i32
    return %arg0, %c0_i32 : i32, i32
  }
}

</mosaic_0001>

<llo_original>
// kernel: net_forward.1
$region0: #{net_forward.1}
  #allocation0 [shape = 'u32[]', space=smem, size = 0x4, offset = 0x4, fixed_abs, tag = 'smem constant byte address 0x4 - core index']
  #allocation1 [shape = 'u32[72,128]{1,0:T(1,128)}', space=vmem, size = 0x9000, scoped, tag = 'internal scratch']
  %s0 = inlined_call_operand.vmem [shape: f32[8,128], index: 0, kind: input, shape index: {}]
  %s1 = inlined_call_operand.hbm [shape: f32[128,128], index: 1, kind: input, shape index: {}]
  %s2 = inlined_call_operand.vmem [shape: f32[1,128], index: 2, kind: input, shape index: {}]
  %s3 = inlined_call_operand.hbm [shape: f32[128,128], index: 3, kind: input, shape index: {}]
  %s4 = inlined_call_operand.vmem [shape: f32[1,128], index: 4, kind: input, shape index: {}]
  %s5 = inlined_call_operand.hbm [shape: f32[128,128], index: 5, kind: input, shape index: {}]
  %s6 = inlined_call_operand.vmem [shape: f32[1,128], index: 6, kind: input, shape index: {}]
  %s7 = inlined_call_operand.hbm [shape: f32[8,128], index: 7, kind: output, shape index: {}]
  %s8 = sld [smem:[#allocation0]]
  $region50: #{net_forward.1} parent=0
    _
  %s10 = ssub.s32 1, %s8
  %s11 = scalar_select 0, %s10, %s8
  $region1: #{net_forward.1} parent=0
    #allocation2 [shape = 'u8[65536]{0}', space=vmem, size = 0x10000, scoped, tag = 'input window, operand 1, single buffered']
    #allocation3 [shape = 's32[1]{0}', space=sflag, size = 0x4, scoped, tag = 'scoped memory for net_forward.1']
    #allocation4 [shape = 's32[1]{0}', space=sflag, size = 0x4, scoped, tag = 'scoped memory for net_forward.1']
    #allocation5 [shape = 'u8[65536]{0}', space=vmem, size = 0x10000, scoped, tag = 'input window, operand 3, single buffered']
    #allocation6 [shape = 's32[1]{0}', space=sflag, size = 0x4, scoped, tag = 'scoped memory for net_forward.1']
    #allocation7 [shape = 'u8[65536]{0}', space=vmem, size = 0x10000, scoped, tag = 'input window, operand 5, single buffered']
    #allocation8 [shape = 'u8[4096]{0}', space=vmem, size = 0x1000, scoped, tag = 'output window, operand 0, single buffered']
    %12 = vsyncpa [#allocation3], 0
    %13 = vsyncpa [#allocation6], 0
    %14 = vsyncpa [#allocation4], 0
    // Predicated region
    $region2: #{net_forward.1} parent=1 // pred_check
      _
    $region3: #{net_forward.1} parent=1 // pred_check_branch
      %16 = sbr.rel (0) target = $region5
    $region4: #{net_forward.1} parent=1 // pred_region
      _
    $region5: #{net_forward.1} parent=1 // pred_fallthru
      _
    // Predicated region
    $region6: #{net_forward.1} parent=1 // pred_check
      _
    $region7: #{net_forward.1} parent=1 // pred_check_branch
      %18 = sbr.rel (0) target = $region9
    $region8: #{net_forward.1} parent=1 // pred_region
      %20 = vsyncadd [#allocation3], 0
      %s21 = sshll.u32 %s1, 4
      %s22 = int_to_ptr.hbm [resolvable:$true] %s21
      %s23 = sshll.u32 [#allocation2], 4
      %s24 = int_to_ptr.vmem [resolvable:$true] %s23
      %29 = dma.hbm_to_vmem [thread:$0]  %s22, 2048, %s24, [#allocation3], 128, 128, 8
    $region9: #{net_forward.1} parent=1 // pred_fallthru
      _
    // Predicated region
    $region10: #{net_forward.1} parent=1 // pred_check
      _
    $region11: #{net_forward.1} parent=1 // pred_check_branch
      %31 = sbr.rel (0) target = $region13
    $region12: #{net_forward.1} parent=1 // pred_region
      _
    $region13: #{net_forward.1} parent=1 // pred_fallthru
      _
    // Predicated region
    $region14: #{net_forward.1} parent=1 // pred_check
      _
    $region15: #{net_forward.1} parent=1 // pred_check_branch
      %33 = sbr.rel (0) target = $region17
    $region16: #{net_forward.1} parent=1 // pred_region
      %35 = vsyncadd [#allocation6], 0
      %s36 = sshll.u32 %s3, 4
      %s37 = int_to_ptr.hbm [resolvable:$true] %s36
      %s38 = sshll.u32 [#allocation5], 4
      %s39 = int_to_ptr.vmem [resolvable:$true] %s38
      %44 = dma.hbm_to_vmem [thread:$0]  %s37, 2048, %s39, [#allocation6], 128, 128, 8
    $region17: #{net_forward.1} parent=1 // pred_fallthru
      _
    // Predicated region
    $region18: #{net_forward.1} parent=1 // pred_check
      _
    $region19: #{net_forward.1} parent=1 // pred_check_branch
      %46 = sbr.rel (0) target = $region21
    $region20: #{net_forward.1} parent=1 // pred_region
      _
    $region21: #{net_forward.1} parent=1 // pred_fallthru
      _
    // Predicated region
    $region22: #{net_forward.1} parent=1 // pred_check
      _
    $region23: #{net_forward.1} parent=1 // pred_check_branch
      %48 = sbr.rel (0) target = $region25
    $region24: #{net_forward.1} parent=1 // pred_region
      %50 = vsyncadd [#allocation6], 0
      %s51 = sshll.u32 %s5, 4
      %s52 = int_to_ptr.hbm [resolvable:$true] %s51
      %s53 = sshll.u32 [#allocation7], 4
      %s54 = int_to_ptr.vmem [resolvable:$true] %s53
      %59 = dma.hbm_to_vmem [thread:$0]  %s52, 2048, %s54, [#allocation6], 128, 128, 8
    $region25: #{net_forward.1} parent=1 // pred_fallthru
      _
    // Predicated region
    $region26: #{net_forward.1} parent=1 // pred_check
      _
    $region27: #{net_forward.1} parent=1 // pred_check_branch
      %61 = sbr.rel (0) target = $region29
    $region28: #{net_forward.1} parent=1 // pred_region
      _
    $region29: #{net_forward.1} parent=1 // pred_fallthru
      _
    // Predicated region
    $region30: #{net_forward.1} parent=1 // pred_check
      _
    $region31: #{net_forward.1} parent=1 // pred_check_branch
      %63 = sbr.rel (0) target = $region33
    $region32: #{net_forward.1} parent=1 // pred_region
      %65 = dma.done [#allocation3], 2048
    $region33: #{net_forward.1} parent=1 // pred_fallthru
      _
    // Predicated region
    $region34: #{net_forward.1} parent=1 // pred_check
      _
    $region35: #{net_forward.1} parent=1 // pred_check_branch
      %67 = sbr.rel (0) target = $region37
    $region36: #{net_forward.1} parent=1 // pred_region
      %69 = dma.done [#allocation6], 2048
    $region37: #{net_forward.1} parent=1 // pred_fallthru
      _
    // Predicated region
    $region38: #{net_forward.1} parent=1 // pred_check
      _
    $region39: #{net_forward.1} parent=1 // pred_check_branch
      %71 = sbr.rel (0) target = $region41
    $region40: #{net_forward.1} parent=1 // pred_region
      %73 = dma.done [#allocation6], 2048
    $region41: #{net_forward.1} parent=1 // pred_fallthru
      _
    %v74 = vld [vmem:[%s0] sm:$0xff]
    %v75 = vld [vmem:[#allocation2] sm:$0xff]
    %v76 = vld [vmem:[#allocation2 + $0x8] sm:$0xff]
    %v77 = vld [vmem:[#allocation2 + $0x10] sm:$0xff]
    %v78 = vld [vmem:[#allocation2 + $0x18] sm:$0xff]
    %v79 = vld [vmem:[#allocation2 + $0x20] sm:$0xff]
    %v80 = vld [vmem:[#allocation2 + $0x28] sm:$0xff]
    %v81 = vld [vmem:[#allocation2 + $0x30] sm:$0xff]
    %v82 = vld [vmem:[#allocation2 + $0x38] sm:$0xff]
    %v83 = vld [vmem:[#allocation2 + $0x40] sm:$0xff]
    %v84 = vld [vmem:[#allocation2 + $0x48] sm:$0xff]
    %v85 = vld [vmem:[#allocation2 + $0x50] sm:$0xff]
    %v86 = vld [vmem:[#allocation2 + $0x58] sm:$0xff]
    %v87 = vld [vmem:[#allocation2 + $0x60] sm:$0xff]
    %v88 = vld [vmem:[#allocation2 + $0x68] sm:$0xff]
    %v89 = vld [vmem:[#allocation2 + $0x70] sm:$0xff]
    %v90 = vld [vmem:[#allocation2 + $0x78] sm:$0xff]
    %v91 = vld [vmem:[%s2] sm:$0x1]
    %v93 = vperm.slane %v91, 0
    %95 = vmatpush.msra.mxu0 %v90
    %96 = vmatpush.msra.mxu0 %v89
    %97 = vmatpush.msra.mxu0 %v88
    %98 = vmatpush.msra.mxu0 %v87
    %99 = vmatpush.msra.mxu0 %v86
    %100 = vmatpush.msra.mxu0 %v85
    %101 = vmatpush.msra.mxu0 %v84
    %102 = vmatpush.msra.mxu0 %v83
    %103 = vmatpush.msra.mxu0 %v82
    %104 = vmatpush.msra.mxu0 %v81
    %105 = vmatpush.msra.mxu0 %v80
    %106 = vmatpush.msra.mxu0 %v79
    %107 = vmatpush.msra.mxu0 %v78
    %108 = vmatpush.msra.mxu0 %v77
    %109 = vmatpush.msra.mxu0 %v76
    %110 = vmatpush.msra.mxu0 %v75
    %111 = vmatmul.f32.gmra.mxu0 %v74
    %v112 = vpop.f32.mrf.mxu0
    %v113 = vadd.f32 %v93, %v112
    %114 = vdwg.mxu0
    %v115 = vmax.f32 %v113, 0.0
    %v116 = vld [vmem:[#allocation5] sm:$0xff]
    %v117 = vld [vmem:[#allocation5 + $0x8] sm:$0xff]
    %v118 = vld [vmem:[#allocation5 + $0x10] sm:$0xff]
    %v119 = vld [vmem:[#allocation5 + $0x18] sm:$0xff]
    %v120 = vld [vmem:[#allocation5 + $0x20] sm:$0xff]
    %v121 = vld [vmem:[#allocation5 + $0x28] sm:$0xff]
    %v122 = vld [vmem:[#allocation5 + $0x30] sm:$0xff]
    %v123 = vld [vmem:[#allocation5 + $0x38] sm:$0xff]
    %v124 = vld [vmem:[#allocation5 + $0x40] sm:$0xff]
    %v125 = vld [vmem:[#allocation5 + $0x48] sm:$0xff]
    %v126 = vld [vmem:[#allocation5 + $0x50] sm:$0xff]
    %v127 = vld [vmem:[#allocation5 + $0x58] sm:$0xff]
    %v128 = vld [vmem:[#allocation5 + $0x60] sm:$0xff]
    %v129 = vld [vmem:[#allocation5 + $0x68] sm:$0xff]
    %v130 = vld [vmem:[#allocation5 + $0x70] sm:$0xff]
    %v131 = vld [vmem:[#allocation5 + $0x78] sm:$0xff]
    %v132 = vld [vmem:[%s4] sm:$0x1]
    %v134 = vperm.slane %v132, 0
    %136 = vmatpush.msra.mxu0 %v131
    %137 = vmatpush.msra.mxu0 %v130
    %138 = vmatpush.msra.mxu0 %v129
    %139 = vmatpush.msra.mxu0 %v128
    %140 = vmatpush.msra.mxu0 %v127
    %141 = vmatpush.msra.mxu0 %v126
    %142 = vmatpush.msra.mxu0 %v125
    %143 = vmatpush.msra.mxu0 %v124
    %144 = vmatpush.msra.mxu0 %v123
    %145 = vmatpush.msra.mxu0 %v122
    %146 = vmatpush.msra.mxu0 %v121
    %147 = vmatpush.msra.mxu0 %v120
    %148 = vmatpush.msra.mxu0 %v119
    %149 = vmatpush.msra.mxu0 %v118
    %150 = vmatpush.msra.mxu0 %v117
    %151 = vmatpush.msra.mxu0 %v116
    %152 = vmatmul.f32.gmra.mxu0 %v115
    %v153 = vpop.f32.mrf.mxu0
    %v154 = vadd.f32 %v134, %v153
    %155 = vdwg.mxu0
    %v156 = vmax.f32 %v154, 0.0
    %v157 = vld [vmem:[#allocation7] sm:$0xff]
    %v158 = vld [vmem:[#allocation7 + $0x8] sm:$0xff]
    %v159 = vld [vmem:[#allocation7 + $0x10] sm:$0xff]
    %v160 = vld [vmem:[#allocation7 + $0x18] sm:$0xff]
    %v161 = vld [vmem:[#allocation7 + $0x20] sm:$0xff]
    %v162 = vld [vmem:[#allocation7 + $0x28] sm:$0xff]
    %v163 = vld [vmem:[#allocation7 + $0x30] sm:$0xff]
    %v164 = vld [vmem:[#allocation7 + $0x38] sm:$0xff]
    %v165 = vld [vmem:[#allocation7 + $0x40] sm:$0xff]
    %v166 = vld [vmem:[#allocation7 + $0x48] sm:$0xff]
    %v167 = vld [vmem:[#allocation7 + $0x50] sm:$0xff]
    %v168 = vld [vmem:[#allocation7 + $0x58] sm:$0xff]
    %v169 = vld [vmem:[#allocation7 + $0x60] sm:$0xff]
    %v170 = vld [vmem:[#allocation7 + $0x68] sm:$0xff]
    %v171 = vld [vmem:[#allocation7 + $0x70] sm:$0xff]
    %v172 = vld [vmem:[#allocation7 + $0x78] sm:$0xff]
    %v173 = vld [vmem:[%s6] sm:$0x1]
    %v175 = vperm.slane %v173, 0
    %177 = vmatpush.msra.mxu0 %v172
    %178 = vmatpush.msra.mxu0 %v171
    %179 = vmatpush.msra.mxu0 %v170
    %180 = vmatpush.msra.mxu0 %v169
    %181 = vmatpush.msra.mxu0 %v168
    %182 = vmatpush.msra.mxu0 %v167
    %183 = vmatpush.msra.mxu0 %v166
    %184 = vmatpush.msra.mxu0 %v165
    %185 = vmatpush.msra.mxu0 %v164
    %186 = vmatpush.msra.mxu0 %v163
    %187 = vmatpush.msra.mxu0 %v162
    %188 = vmatpush.msra.mxu0 %v161
    %189 = vmatpush.msra.mxu0 %v160
    %190 = vmatpush.msra.mxu0 %v159
    %191 = vmatpush.msra.mxu0 %v158
    %192 = vmatpush.msra.mxu0 %v157
    %193 = vmatmul.f32.gmra.mxu0 %v156
    %v194 = vpop.f32.mrf.mxu0
    %v195 = vadd.f32 %v175, %v194
    %196 = vdwg.mxu0
    %197 = vst [vmem:[#allocation8] sm:$0xff] %v195
    // Predicated region
    $region42: #{net_forward.1} parent=1 // pred_check
      _
    $region43: #{net_forward.1} parent=1 // pred_check_branch
      %199 = sbr.rel (0) target = $region45
    $region44: #{net_forward.1} parent=1 // pred_region
      %201 = vsyncadd [#allocation4], 0
      %s203 = sshll.u32 [#allocation8], 4
      %s204 = int_to_ptr.vmem [resolvable:$true] %s203
      %s205 = sshll.u32 %s7, 4
      %s206 = int_to_ptr.hbm [resolvable:$true] %s205
      %208 = dma.vmem_to_hbm [thread:$0]  %s204, 128, %s206, [#allocation4]
    $region45: #{net_forward.1} parent=1 // pred_fallthru
      _
    // Predicated region
    $region46: #{net_forward.1} parent=1 // pred_check
      _
    $region47: #{net_forward.1} parent=1 // pred_check_branch
      %210 = sbr.rel (0) target = $region49
    $region48: #{net_forward.1} parent=1 // pred_region
      %212 = dma.done [#allocation4], 128
    $region49: #{net_forward.1} parent=1 // pred_fallthru
      _
    %213 = vsyncpa [#allocation3], 1
    %214 = vsyncpa [#allocation6], 1
    %215 = vsyncpa [#allocation4], 1

// kernel: net_forward.1
$region0: #{net_forward.1}
  #allocation0 [shape = 'u32[]', space=smem, size = 0x4, offset = 0x4, fixed_abs, tag = 'smem constant byte address 0x4 - core index']
  #allocation1 [shape = 'u32[72,128]{1,0:T(1,128)}', space=vmem, size = 0x9000, scoped, tag = 'internal scratch']
  %s0 = inlined_call_operand.vmem [shape: f32[8,128], index: 0, kind: input, shape index: {}]
  %s1 = inlined_call_operand.hbm [shape: f32[128,128], index: 1, kind: input, shape index: {}]
  %s2 = inlined_call_operand.vmem [shape: f32[1,128], index: 2, kind: input, shape index: {}]
  %s3 = inlined_call_operand.hbm [shape: f32[128,128], index: 3, kind: input, shape index: {}]
  %s4 = inlined_call_operand.vmem [shape: f32[1,128], index: 4, kind: input, shape index: {}]
  %s5 = inlined_call_operand.hbm [shape: f32[128,128], index: 5, kind: input, shape index: {}]
  %s6 = inlined_call_operand.vmem [shape: f32[1,128], index: 6, kind: input, shape index: {}]
  %s7 = inlined_call_operand.hbm [shape: f32[8,128], index: 7, kind: output, shape index: {}]
  %s8 = sld [smem:[#allocation0]]
  $region50: #{net_forward.1} parent=0
    _
  %s10 = ssub.s32 1, %s8
  %s11 = scalar_select 0, %s10, %s8
  $region1: #{net_forward.1} parent=0
    #allocation2 [shape = 'u8[65536]{0}', space=vmem, size = 0x10000, scoped, tag = 'input window, operand 1, single buffered']
    #allocation3 [shape = 's32[1]{0}', space=sflag, size = 0x4, scoped, tag = 'scoped memory for net_forward.1']
    #allocation4 [shape = 's32[1]{0}', space=sflag, size = 0x4, scoped, tag = 'scoped memory for net_forward.1']
    #allocation5 [shape = 'u8[65536]{0}', space=vmem, size = 0x10000, scoped, tag = 'input window, operand 3, single buffered']
    #allocation6 [shape = 's32[1]{0}', space=sflag, size = 0x4, scoped, tag = 'scoped memory for net_forward.1']
    #allocation7 [shape = 'u8[65536]{0}', space=vmem, size = 0x10000, scoped, tag = 'input window, operand 5, single buffered']
    #allocation8 [shape = 'u8[4096]{0}', space=vmem, size = 0x1000, scoped, tag = 'output window, operand 0, single buffered']
    %12 = vsyncpa [#allocation3], 0
    %13 = vsyncpa [#allocation6], 0
    %14 = vsyncpa [#allocation4], 0
    // Predicated region
    $region2: #{net_forward.1} parent=1 // pred_check
      _
    $region3: #{net_forward.1} parent=1 // pred_check_branch
      %16 = sbr.rel (0) target = $region5
    $region4: #{net_forward.1} parent=1 // pred_region
      _
    $region5: #{net_forward.1} parent=1 // pred_fallthru
      _
    // Predicated region
    $region6: #{net_forward.1} parent=1 // pred_check
      _
    $region7: #{net_forward.1} parent=1 // pred_check_branch
      %18 = sbr.rel (0) target = $region9
    $region8: #{net_forward.1} parent=1 // pred_region
      %20 = vsyncadd [#allocation3], 0
      %s21 = sshll.u32 %s1, 4
      %s22 = int_to_ptr.hbm [resolvable:$true] %s21
      %s23 = sshll.u32 [#allocation2], 4
      %s24 = int_to_ptr.vmem [resolvable:$true] %s23
      %29 = dma.hbm_to_vmem [thread:$0]  %s22, 2048, %s24, [#allocation3], 128, 128, 8
    $region9: #{net_forward.1} parent=1 // pred_fallthru
      _
    // Predicated region
    $region10: #{net_forward.1} parent=1 // pred_check
      _
    $region11: #{net_forward.1} parent=1 // pred_check_branch
      %31 = sbr.rel (0) target = $region13
    $region12: #{net_forward.1} parent=1 // pred_region
      _
    $region13: #{net_forward.1} parent=1 // pred_fallthru
      _
    // Predicated region
    $region14: #{net_forward.1} parent=1 // pred_check
      _
    $region15: #{net_forward.1} parent=1 // pred_check_branch
      %33 = sbr.rel (0) target = $region17
    $region16: #{net_forward.1} parent=1 // pred_region
      %35 = vsyncadd [#allocation6], 0
      %s36 = sshll.u32 %s3, 4
      %s37 = int_to_ptr.hbm [resolvable:$true] %s36
      %s38 = sshll.u32 [#allocation5], 4
      %s39 = int_to_ptr.vmem [resolvable:$true] %s38
      %44 = dma.hbm_to_vmem [thread:$0]  %s37, 2048, %s39, [#allocation6], 128, 128, 8
    $region17: #{net_forward.1} parent=1 // pred_fallthru
      _
    // Predicated region
    $region18: #{net_forward.1} parent=1 // pred_check
      _
    $region19: #{net_forward.1} parent=1 // pred_check_branch
      %46 = sbr.rel (0) target = $region21
    $region20: #{net_forward.1} parent=1 // pred_region
      _
    $region21: #{net_forward.1} parent=1 // pred_fallthru
      _
    // Predicated region
    $region22: #{net_forward.1} parent=1 // pred_check
      _
    $region23: #{net_forward.1} parent=1 // pred_check_branch
      %48 = sbr.rel (0) target = $region25
    $region24: #{net_forward.1} parent=1 // pred_region
      %50 = vsyncadd [#allocation6], 0
      %s51 = sshll.u32 %s5, 4
      %s52 = int_to_ptr.hbm [resolvable:$true] %s51
      %s53 = sshll.u32 [#allocation7], 4
      %s54 = int_to_ptr.vmem [resolvable:$true] %s53
      %59 = dma.hbm_to_vmem [thread:$0]  %s52, 2048, %s54, [#allocation6], 128, 128, 8
    $region25: #{net_forward.1} parent=1 // pred_fallthru
      _
    // Predicated region
    $region26: #{net_forward.1} parent=1 // pred_check
      _
    $region27: #{net_forward.1} parent=1 // pred_check_branch
      %61 = sbr.rel (0) target = $region29
    $region28: #{net_forward.1} parent=1 // pred_region
      _
    $region29: #{net_forward.1} parent=1 // pred_fallthru
      _
    // Predicated region
    $region30: #{net_forward.1} parent=1 // pred_check
      _
    $region31: #{net_forward.1} parent=1 // pred_check_branch
      %63 = sbr.rel (0) target = $region33
    $region32: #{net_forward.1} parent=1 // pred_region
      %65 = dma.done [#allocation3], 2048
    $region33: #{net_forward.1} parent=1 // pred_fallthru
      _
    // Predicated region
    $region34: #{net_forward.1} parent=1 // pred_check
      _
    $region35: #{net_forward.1} parent=1 // pred_check_branch
      %67 = sbr.rel (0) target = $region37
    $region36: #{net_forward.1} parent=1 // pred_region
      %69 = dma.done [#allocation6], 2048
    $region37: #{net_forward.1} parent=1 // pred_fallthru
      _
    // Predicated region
    $region38: #{net_forward.1} parent=1 // pred_check
      _
    $region39: #{net_forward.1} parent=1 // pred_check_branch
      %71 = sbr.rel (0) target = $region41
    $region40: #{net_forward.1} parent=1 // pred_region
      %73 = dma.done [#allocation6], 2048
    $region41: #{net_forward.1} parent=1 // pred_fallthru
      _
    %v74 = vld [vmem:[%s0] sm:$0xff]
    %v75 = vld [vmem:[#allocation2] sm:$0xff]
    %v76 = vld [vmem:[#allocation2 + $0x8] sm:$0xff]
    %v77 = vld [vmem:[#allocation2 + $0x10] sm:$0xff]
    %v78 = vld [vmem:[#allocation2 + $0x18] sm:$0xff]
    %v79 = vld [vmem:[#allocation2 + $0x20] sm:$0xff]
    %v80 = vld [vmem:[#allocation2 + $0x28] sm:$0xff]
    %v81 = vld [vmem:[#allocation2 + $0x30] sm:$0xff]
    %v82 = vld [vmem:[#allocation2 + $0x38] sm:$0xff]
    %v83 = vld [vmem:[#allocation2 + $0x40] sm:$0xff]
    %v84 = vld [vmem:[#allocation2 + $0x48] sm:$0xff]
    %v85 = vld [vmem:[#allocation2 + $0x50] sm:$0xff]
    %v86 = vld [vmem:[#allocation2 + $0x58] sm:$0xff]
    %v87 = vld [vmem:[#allocation2 + $0x60] sm:$0xff]
    %v88 = vld [vmem:[#allocation2 + $0x68] sm:$0xff]
    %v89 = vld [vmem:[#allocation2 + $0x70] sm:$0xff]
    %v90 = vld [vmem:[#allocation2 + $0x78] sm:$0xff]
    %v91 = vld [vmem:[%s2] sm:$0x1]
    %v93 = vperm.slane %v91, 0
    %95 = vmatpush.msra.mxu0 %v90
    %96 = vmatpush.msra.mxu0 %v89
    %97 = vmatpush.msra.mxu0 %v88
    %98 = vmatpush.msra.mxu0 %v87
    %99 = vmatpush.msra.mxu0 %v86
    %100 = vmatpush.msra.mxu0 %v85
    %101 = vmatpush.msra.mxu0 %v84
    %102 = vmatpush.msra.mxu0 %v83
    %103 = vmatpush.msra.mxu0 %v82
    %104 = vmatpush.msra.mxu0 %v81
    %105 = vmatpush.msra.mxu0 %v80
    %106 = vmatpush.msra.mxu0 %v79
    %107 = vmatpush.msra.mxu0 %v78
    %108 = vmatpush.msra.mxu0 %v77
    %109 = vmatpush.msra.mxu0 %v76
    %110 = vmatpush.msra.mxu0 %v75
    %111 = vmatmul.f32.gmra.mxu0 %v74
    %v112 = vpop.f32.mrf.mxu0
    %v113 = vadd.f32 %v93, %v112
    %114 = vdwg.mxu0
    %v115 = vmax.f32 %v113, 0.0
    %v116 = vld [vmem:[#allocation5] sm:$0xff]
    %v117 = vld [vmem:[#allocation5 + $0x8] sm:$0xff]
    %v118 = vld [vmem:[#allocation5 + $0x10] sm:$0xff]
    %v119 = vld [vmem:[#allocation5 + $0x18] sm:$0xff]
    %v120 = vld [vmem:[#allocation5 + $0x20] sm:$0xff]
    %v121 = vld [vmem:[#allocation5 + $0x28] sm:$0xff]
    %v122 = vld [vmem:[#allocation5 + $0x30] sm:$0xff]
    %v123 = vld [vmem:[#allocation5 + $0x38] sm:$0xff]
    %v124 = vld [vmem:[#allocation5 + $0x40] sm:$0xff]
    %v125 = vld [vmem:[#allocation5 + $0x48] sm:$0xff]
    %v126 = vld [vmem:[#allocation5 + $0x50] sm:$0xff]
    %v127 = vld [vmem:[#allocation5 + $0x58] sm:$0xff]
    %v128 = vld [vmem:[#allocation5 + $0x60] sm:$0xff]
    %v129 = vld [vmem:[#allocation5 + $0x68] sm:$0xff]
    %v130 = vld [vmem:[#allocation5 + $0x70] sm:$0xff]
    %v131 = vld [vmem:[#allocation5 + $0x78] sm:$0xff]
    %v132 = vld [vmem:[%s4] sm:$0x1]
    %v134 = vperm.slane %v132, 0
    %136 = vmatpush.msra.mxu0 %v131
    %137 = vmatpush.msra.mxu0 %v130
    %138 = vmatpush.msra.mxu0 %v129
    %139 = vmatpush.msra.mxu0 %v128
    %140 = vmatpush.msra.mxu0 %v127
    %141 = vmatpush.msra.mxu0 %v126
    %142 = vmatpush.msra.mxu0 %v125
    %143 = vmatpush.msra.mxu0 %v124
    %144 = vmatpush.msra.mxu0 %v123
    %145 = vmatpush.msra.mxu0 %v122
    %146 = vmatpush.msra.mxu0 %v121
    %147 = vmatpush.msra.mxu0 %v120
    %148 = vmatpush.msra.mxu0 %v119
    %149 = vmatpush.msra.mxu0 %v118
    %150 = vmatpush.msra.mxu0 %v117
    %151 = vmatpush.msra.mxu0 %v116
    %152 = vmatmul.f32.gmra.mxu0 %v115
    %v153 = vpop.f32.mrf.mxu0
    %v154 = vadd.f32 %v134, %v153
    %155 = vdwg.mxu0
    %v156 = vmax.f32 %v154, 0.0
    %v157 = vld [vmem:[#allocation7] sm:$0xff]
    %v158 = vld [vmem:[#allocation7 + $0x8] sm:$0xff]
    %v159 = vld [vmem:[#allocation7 + $0x10] sm:$0xff]
    %v160 = vld [vmem:[#allocation7 + $0x18] sm:$0xff]
    %v161 = vld [vmem:[#allocation7 + $0x20] sm:$0xff]
    %v162 = vld [vmem:[#allocation7 + $0x28] sm:$0xff]
    %v163 = vld [vmem:[#allocation7 + $0x30] sm:$0xff]
    %v164 = vld [vmem:[#allocation7 + $0x38] sm:$0xff]
    %v165 = vld [vmem:[#allocation7 + $0x40] sm:$0xff]
    %v166 = vld [vmem:[#allocation7 + $0x48] sm:$0xff]
    %v167 = vld [vmem:[#allocation7 + $0x50] sm:$0xff]
    %v168 = vld [vmem:[#allocation7 + $0x58] sm:$0xff]
    %v169 = vld [vmem:[#allocation7 + $0x60] sm:$0xff]
    %v170 = vld [vmem:[#allocation7 + $0x68] sm:$0xff]
    %v171 = vld [vmem:[#allocation7 + $0x70] sm:$0xff]
    %v172 = vld [vmem:[#allocation7 + $0x78] sm:$0xff]
    %v173 = vld [vmem:[%s6] sm:$0x1]
    %v175 = vperm.slane %v173, 0
    %177 = vmatpush.msra.mxu0 %v172
    %178 = vmatpush.msra.mxu0 %v171
    %179 = vmatpush.msra.mxu0 %v170
    %180 = vmatpush.msra.mxu0 %v169
    %181 = vmatpush.msra.mxu0 %v168
    %182 = vmatpush.msra.mxu0 %v167
    %183 = vmatpush.msra.mxu0 %v166
    %184 = vmatpush.msra.mxu0 %v165
    %185 = vmatpush.msra.mxu0 %v164
    %186 = vmatpush.msra.mxu0 %v163
    %187 = vmatpush.msra.mxu0 %v162
    %188 = vmatpush.msra.mxu0 %v161
    %189 = vmatpush.msra.mxu0 %v160
    %190 = vmatpush.msra.mxu0 %v159
    %191 = vmatpush.msra.mxu0 %v158
    %192 = vmatpush.msra.mxu0 %v157
    %193 = vmatmul.f32.gmra.mxu0 %v156
    %v194 = vpop.f32.mrf.mxu0
    %v195 = vadd.f32 %v175, %v194
    %196 = vdwg.mxu0
    %197 = vst [vmem:[#allocation8] sm:$0xff] %v195
    // Predicated region
    $region42: #{net_forward.1} parent=1 // pred_check
      _
    $region43: #{net_forward.1} parent=1 // pred_check_branch
      %199 = sbr.rel (0) target = $region45
    $region44: #{net_forward.1} parent=1 // pred_region
      %201 = vsyncadd [#allocation4], 0
      %s203 = sshll.u32 [#allocation8], 4
      %s204 = int_to_ptr.vmem [resolvable:$true] %s203
      %s205 = sshll.u32 %s7, 4
      %s206 = int_to_ptr.hbm [resolvable:$true] %s205
      %208 = dma.vmem_to_hbm [thread:$0]  %s204, 128, %s206, [#allocation4]
    $region45: #{net_forward.1} parent=1 // pred_fallthru
      _
    // Predicated region
    $region46: #{net_forward.1} parent=1 // pred_check
      _
    $region47: #{net_forward.1} parent=1 // pred_check_branch
      %210 = sbr.rel (0) target = $region49
    $region48: #{net_forward.1} parent=1 // pred_region
      %212 = dma.done [#allocation4], 128
    $region49: #{net_forward.1} parent=1 // pred_fallthru
      _
    %213 = vsyncpa [#allocation3], 1
    %214 = vsyncpa [#allocation6], 1
    %215 = vsyncpa [#allocation4], 1

</llo_original>
